<compile_context>
chip_gen: v6e
topology: v6e:2x2x1
jax: 0.10.0
libtpu: 0.0.40
codegen_flags: <defaults>
</compile_context>

<pallas_src>
import math
import numpy as np
import jax
import jax.numpy as jnp
from jax.experimental import pallas as pl
from jax.experimental.pallas import tpu as pltpu


def _round_up(x, m):
    return ((x + m - 1) // m) * m


# ---------------------------------------------------------------------------
# Pallas kernel: DDS block-sparse matmul  y = x @ W_blocksparse
#
# grid = (M_tiles, E) where E = #nonzero (k_blk, n_blk) entries flattened and
# sorted by output column block n_blk (+ one dummy per empty column).
# Scalar-prefetched LUTs (SMEM) drive the data-dependent BlockSpec gathers:
#   kidx[e]  : K block index of entry e          (input gather)
#   widx[e]  : stored weight block index of e    (weight gather)
#   nidx[e]  : output column block index of e    (output placement)
#   first[e] : 1 iff e is the first entry of its column  -> zero accumulator
#   last[e]  : 1 iff e is the last entry of its column   -> write output
#   valid[e] : 0 for the dummy entry of an all-zero column (skip compute)
# ---------------------------------------------------------------------------
def _dds_kernel(kidx_ref, widx_ref, nidx_ref, first_ref, last_ref, valid_ref,
                x_ref, w_ref, o_ref, acc_ref):
    e = pl.program_id(1)

    @pl.when(first_ref[e] == 1)
    def _():
        acc_ref[...] = jnp.zeros_like(acc_ref)

    @pl.when(valid_ref[e] == 1)
    def _():
        acc_ref[...] += jnp.dot(
            x_ref[...], w_ref[...], preferred_element_type=jnp.float32
        )

    @pl.when(last_ref[e] == 1)
    def _():
        o_ref[...] = acc_ref[...].astype(o_ref.dtype)


def _blocksparse_dds_matmul(x2d, w_blocks, kidx, widx, nidx, first, last, valid,
                            *, block, n_blocks, tm, out_dtype):
    M, _ = x2d.shape
    N = n_blocks * block
    E = int(kidx.shape[0])
    grid = (M // tm, E)

    return pl.pallas_call(
        _dds_kernel,
        out_shape=jax.ShapeDtypeStruct((M, N), out_dtype),
        grid_spec=pltpu.PrefetchScalarGridSpec(
            num_scalar_prefetch=6,
            grid=grid,
            in_specs=[
                # dense input tile (tm, block): K block chosen from the LUT
                pl.BlockSpec(
                    (tm, block),
                    lambda i, e, kidx, widx, nidx, first, last, valid: (i, kidx[e]),
                ),
                # one stored weight block (block, block): leading dim squeezed
                pl.BlockSpec(
                    (None, block, block),
                    lambda i, e, kidx, widx, nidx, first, last, valid: (widx[e], 0, 0),
                ),
            ],
            out_specs=pl.BlockSpec(
                (tm, block),
                lambda i, e, kidx, widx, nidx, first, last, valid: (i, nidx[e]),
            ),
            scratch_shapes=[pltpu.VMEM((tm, block), jnp.float32)],
        ),
        compiler_params=pltpu.CompilerParams(
            dimension_semantics=("parallel", "arbitrary")
        ),
    )(kidx, widx, nidx, first, last, valid, x2d, w_blocks)


# ---------------------------------------------------------------------------
# Linear module equivalent
# ---------------------------------------------------------------------------
class BlockSparseLinear:
    def __init__(self, in_features, out_features, block, layout, key):
        layout = np.asarray(layout)
        assert layout.shape == (in_features // block, out_features // block)
        self.in_features = in_features
        self.out_features = out_features
        self.block = block
        self.layout = layout

        nnz = int(layout.sum())
        assert nnz > 0, "layout must contain at least one nonzero block"
        # torch.nn.init.kaiming_uniform_(w, a=sqrt(5)) on (nnz, block, block)
        # => fan_in = block*block, bound = 1/sqrt(fan_in) = 1/block
        bound = 1.0 / math.sqrt(block * block)
        self.weight = jax.random.uniform(
            key, (nnz, block, block), jnp.float32, -bound, bound
        )
        # MXU-native compute copy (bf16 inputs, f32 accumulation in-kernel)
        self.weight_bf16 = self.weight.astype(jnp.bfloat16)

        # -------- flattened LUT, sorted by output column block --------
        Kb, Nb = layout.shape
        nz = np.argwhere(layout != 0)  # row-major (k_blk, n_blk) == storage order
        per_col = [[] for _ in range(Nb)]
        for w_i, (k, n) in enumerate(nz):
            per_col[int(n)].append((int(k), int(w_i)))

        kidx, widx, nidx, first, last, valid = [], [], [], [], [], []
        for n in range(Nb):
            col = per_col[n]
            if not col:
                # dummy entry: zero-fills + writes the empty output column block
                kidx.append(0); widx.append(0); nidx.append(n)
                first.append(1); last.append(1); valid.append(0)
            else:
                for l, (k, w_i) in enumerate(col):
                    kidx.append(k); widx.append(w_i); nidx.append(n)
                    first.append(1 if l == 0 else 0)
                    last.append(1 if l == len(col) - 1 else 0)
                    valid.append(1)

        self.kidx = jnp.asarray(np.array(kidx, np.int32))
        self.widx = jnp.asarray(np.array(widx, np.int32))
        self.nidx = jnp.asarray(np.array(nidx, np.int32))
        self.first = jnp.asarray(np.array(first, np.int32))
        self.last = jnp.asarray(np.array(last, np.int32))
        self.valid = jnp.asarray(np.array(valid, np.int32))
        self.n_blocks = Nb

    def dense_weight(self):
        """Materialized dense (in_features, out_features) weight (reference only)."""
        W = np.zeros((self.in_features, self.out_features), np.float32)
        w_np = np.asarray(self.weight)
        nz = np.argwhere(self.layout != 0)
        b = self.block
        for idx, (k, n) in enumerate(nz):
            W[k * b:(k + 1) * b, n * b:(n + 1) * b] = w_np[idx]
        return W

    def __call__(self, x):
        # Mirror MatMul._pad_shape: pad the dense operand to 4D.
        while x.ndim < 4:
            x = x[None]
        lead = x.shape[:-1]
        out_dtype = x.dtype
        M = int(np.prod(lead))
        x2d = x.reshape(M, self.in_features)

        # Large M tiles amortize grid-step overhead; pad M up instead of tm=M.
        # (tm, block) bf16 tile at tm=512 is 128 KiB -> well inside v7x 64 MiB VMEM.
        if M >= 512:
            tm = 512
        else:
            tm = _round_up(M, 8)
        M_pad = _round_up(M, tm)
        if M_pad != M:
            x2d = jnp.pad(x2d, ((0, M_pad - M), (0, 0)))

        y2d = _blocksparse_dds_matmul(
            x2d.astype(jnp.bfloat16), self.weight_bf16,
            self.kidx, self.widx, self.nidx, self.first, self.last, self.valid,
            block=self.block, n_blocks=self.n_blocks, tm=tm, out_dtype=out_dtype,
        )
        if M_pad != M:
            y2d = y2d[:M]
        return y2d.reshape(lead + (self.out_features,))


if __name__ == "__main__":
    key = jax.random.PRNGKey(0)
    k_w, k_x = jax.random.split(key)

    block = 128
    in_features = 256      # 2 block rows
    out_features = 512     # 4 block cols (last one empty -> exercises dummy path)
    layout = np.array([[1, 0, 1, 0],
                       [0, 1, 1, 0]], dtype=np.int64)  # (in//block, out//block)

    lin = BlockSparseLinear(in_features, out_features, block, layout, k_w)

    # small 4D input, feature dim last
    x = jax.random.normal(k_x, (2, 2, 8, in_features), jnp.float32)

    y = lin(x)
    y = jax.block_until_ready(y)

    # sanity check against a dense reference (numpy, f32); bf16-compute tolerance
    W = lin.dense_weight()
    y_ref = np.asarray(x).reshape(-1, in_features) @ W
    y_ref = y_ref.reshape(2, 2, 8, out_features)
    assert y.shape == (2, 2, 8, out_features)
    np.testing.assert_allclose(np.asarray(y), y_ref, rtol=3e-2, atol=5e-3)

    print("KERNEL_OK")
</pallas_src>

<mosaic_0001>
module attributes {stable_mosaic.version = 11 : i64} {
  func.func @_dds_kernel(%arg0: i32, %arg1: i32, %arg2: memref<5xi32, #tpu.memory_space<smem>>, %arg3: memref<5xi32, #tpu.memory_space<smem>>, %arg4: memref<5xi32, #tpu.memory_space<smem>>, %arg5: memref<5xi32, #tpu.memory_space<smem>>, %arg6: memref<5xi32, #tpu.memory_space<smem>>, %arg7: memref<5xi32, #tpu.memory_space<smem>>, %arg8: memref<32x128xbf16, #tpu.memory_space<vmem>>, %arg9: memref<1x128x128xbf16, #tpu.memory_space<vmem>>, %arg10: memref<32x128xf32, #tpu.memory_space<vmem>>, %arg11: memref<32x128xf32, #tpu.memory_space<vmem>>) attributes {dimension_semantics = [#tpu.dimension_semantics<parallel>, #tpu.dimension_semantics<arbitrary>], iteration_bounds = array<i64: 1, 5>, scalar_prefetch = 6 : i64, scratch_operands = 1 : i64, tpu.core_type = #tpu.core_type<tc>, window_params = [{transform_indices = @transform_0, window_bounds = array<i64: 32, 128>}, {transform_indices = @transform_1, window_bounds = array<i64: 1, 128, 128>}, {transform_indices = @transform_2, window_bounds = array<i64: 32, 128>}]} {
    %0 = arith.index_cast %arg1 : i32 to index
    %1 = memref.load %arg5[%0] : memref<5xi32, #tpu.memory_space<smem>>
    %c1_i32 = arith.constant 1 : i32
    %2 = arith.cmpi eq, %1, %c1_i32 : i32
    %3 = arith.extui %2 : i1 to i32
    %c0_i32 = arith.constant 0 : i32
    %4 = arith.cmpi ne, %3, %c0_i32 : i32
    scf.if %4 {
      %cst = arith.constant 0.000000e+00 : f32
      %15 = vector.broadcast %cst : f32 to vector<32x128xf32>
      %c0 = arith.constant 0 : index
      %c0_4 = arith.constant 0 : index
      %16 = vector.load %arg11[%c0, %c0_4] : memref<32x128xf32, #tpu.memory_space<vmem>>, vector<32x128xf32>
      tpu.vector_store %arg11[%c0, %c0_4], %15 {strides = array<i32>} : memref<32x128xf32, #tpu.memory_space<vmem>>, vector<32x128xf32>,
    } else {
    }
    %5 = arith.index_cast %arg1 : i32 to index
    %6 = memref.load %arg7[%5] : memref<5xi32, #tpu.memory_space<smem>>
    %c1_i32_0 = arith.constant 1 : i32
    %7 = arith.cmpi eq, %6, %c1_i32_0 : i32
    %8 = arith.extui %7 : i1 to i32
    %c0_i32_1 = arith.constant 0 : i32
    %9 = arith.cmpi ne, %8, %c0_i32_1 : i32
    scf.if %9 {
      %c0 = arith.constant 0 : index
      %c0_4 = arith.constant 0 : index
      %15 = vector.load %arg11[%c0, %c0_4] : memref<32x128xf32, #tpu.memory_space<vmem>>, vector<32x128xf32>
      %c0_5 = arith.constant 0 : index
      %c0_6 = arith.constant 0 : index
      %16 = vector.load %arg8[%c0_5, %c0_6] : memref<32x128xbf16, #tpu.memory_space<vmem>>, vector<32x128xbf16>
      %c0_7 = arith.constant 0 : index
      %c0_8 = arith.constant 0 : index
      %c0_9 = arith.constant 0 : index
      %17 = vector.load %arg9[%c0_7, %c0_8, %c0_9] : memref<1x128x128xbf16, #tpu.memory_space<vmem>>, vector<1x128x128xbf16>
      %18 = vector.shape_cast %17 : vector<1x128x128xbf16> to vector<128x128xbf16>
      %cst = arith.constant dense<0.000000e+00> : vector<32x128xf32>
      %19 = tpu.matmul %16, %18, %cst {dimension_numbers = #tpu.dot_dimension_numbers<[1], [0], [0], [1], [0, 0, 1, 1], [], []>} : vector<32x128xbf16>, vector<128x128xbf16>, vector<32x128xf32> -> vector<32x128xf32>
      %20 = arith.addf %15, %19 : vector<32x128xf32>
      %c0_10 = arith.constant 0 : index
      %c0_11 = arith.constant 0 : index
      %21 = vector.load %arg11[%c0_10, %c0_11] : memref<32x128xf32, #tpu.memory_space<vmem>>, vector<32x128xf32>
      tpu.vector_store %arg11[%c0_10, %c0_11], %20 {strides = array<i32>} : memref<32x128xf32, #tpu.memory_space<vmem>>, vector<32x128xf32>,
    } else {
    }
    %10 = arith.index_cast %arg1 : i32 to index
    %11 = memref.load %arg6[%10] : memref<5xi32, #tpu.memory_space<smem>>
    %c1_i32_2 = arith.constant 1 : i32
    %12 = arith.cmpi eq, %11, %c1_i32_2 : i32
    %13 = arith.extui %12 : i1 to i32
    %c0_i32_3 = arith.constant 0 : i32
    %14 = arith.cmpi ne, %13, %c0_i32_3 : i32
    scf.if %14 {
      %c0 = arith.constant 0 : index
      %c0_4 = arith.constant 0 : index
      %15 = vector.load %arg11[%c0, %c0_4] : memref<32x128xf32, #tpu.memory_space<vmem>>, vector<32x128xf32>
      %c0_5 = arith.constant 0 : index
      %c0_6 = arith.constant 0 : index
      %16 = vector.load %arg10[%c0_5, %c0_6] : memref<32x128xf32, #tpu.memory_space<vmem>>, vector<32x128xf32>
      tpu.vector_store %arg10[%c0_5, %c0_6], %15 {strides = array<i32>} : memref<32x128xf32, #tpu.memory_space<vmem>>, vector<32x128xf32>,
    } else {
    }
    return
  }
  func.func @transform_0(%arg0: i32, %arg1: i32, %arg2: memref<5xi32, #tpu.memory_space<smem>>, %arg3: memref<5xi32, #tpu.memory_space<smem>>, %arg4: memref<5xi32, #tpu.memory_space<smem>>, %arg5: memref<5xi32, #tpu.memory_space<smem>>, %arg6: memref<5xi32, #tpu.memory_space<smem>>, %arg7: memref<5xi32, #tpu.memory_space<smem>>) -> (i32, i32) {
    %0 = arith.index_cast %arg1 : i32 to index
    %1 = memref.load %arg2[%0] : memref<5xi32, #tpu.memory_space<smem>>
    %c0_i32 = arith.constant 0 : i32
    return %arg0, %1 : i32, i32
  }
  func.func @transform_1(%arg0: i32, %arg1: i32, %arg2: memref<5xi32, #tpu.memory_space<smem>>, %arg3: memref<5xi32, #tpu.memory_space<smem>>, %arg4: memref<5xi32, #tpu.memory_space<smem>>, %arg5: memref<5xi32, #tpu.memory_space<smem>>, %arg6: memref<5xi32, #tpu.memory_space<smem>>, %arg7: memref<5xi32, #tpu.memory_space<smem>>) -> (i32, i32, i32) {
    %0 = arith.index_cast %arg1 : i32 to index
    %1 = memref.load %arg3[%0] : memref<5xi32, #tpu.memory_space<smem>>
    %c0_i32 = arith.constant 0 : i32
    %c0_i32_0 = arith.constant 0 : i32
    %c0_i32_1 = arith.constant 0 : i32
    return %1, %c0_i32, %c0_i32_0 : i32, i32, i32
  }
  func.func @transform_2(%arg0: i32, %arg1: i32, %arg2: memref<5xi32, #tpu.memory_space<smem>>, %arg3: memref<5xi32, #tpu.memory_space<smem>>, %arg4: memref<5xi32, #tpu.memory_space<smem>>, %arg5: memref<5xi32, #tpu.memory_space<smem>>, %arg6: memref<5xi32, #tpu.memory_space<smem>>, %arg7: memref<5xi32, #tpu.memory_space<smem>>) -> (i32, i32) {
    %0 = arith.index_cast %arg1 : i32 to index
    %1 = memref.load %arg4[%0] : memref<5xi32, #tpu.memory_space<smem>>
    %c0_i32 = arith.constant 0 : i32
    return %arg0, %1 : i32, i32
  }
}

</mosaic_0001>

<llo_original>
// kernel: tpu_custom_call.1
$region0: #{tpu_custom_call.1}
  #allocation0 [shape = 'u32[]', space=smem, size = 0x4, offset = 0x4, fixed_abs, tag = 'smem constant byte address 0x4 - core index']
  #allocation1 [shape = 'u32[144,128]{1,0:T(1,128)}', space=vmem, size = 0x12000, scoped, tag = 'internal scratch']
  #allocation2 [shape = 'f32[32,128]{1,0:T(8,128)}', space=vmem, size = 0x4000, scoped, tag = 'scratch operand']
  #allocation3 [shape = 's32[1]{0}', space=sflag, size = 0x4, scoped, tag = 'scoped memory for tpu_custom_call.1']
  #allocation4 [shape = 'u8[512]{0}', space=smem, size = 0x200, scoped, tag = 'prefetched SMEM operand 0']
  #allocation5 [shape = 'u8[512]{0}', space=smem, size = 0x200, scoped, tag = 'prefetched SMEM operand 1']
  #allocation6 [shape = 'u8[512]{0}', space=smem, size = 0x200, scoped, tag = 'prefetched SMEM operand 2']
  #allocation7 [shape = 'u8[512]{0}', space=smem, size = 0x200, scoped, tag = 'prefetched SMEM operand 3']
  #allocation8 [shape = 'u8[512]{0}', space=smem, size = 0x200, scoped, tag = 'prefetched SMEM operand 4']
  #allocation9 [shape = 'u8[512]{0}', space=smem, size = 0x200, scoped, tag = 'prefetched SMEM operand 5']
  %s0 = inlined_call_operand.hbm [shape: s32[5], index: 0, kind: input, shape index: {}]
  %s1 = inlined_call_operand.vmem [shape: s32[5], index: 1, kind: input, shape index: {}]
  %s2 = inlined_call_operand.vmem [shape: s32[5], index: 2, kind: input, shape index: {}]
  %s3 = inlined_call_operand.vmem [shape: s32[5], index: 3, kind: input, shape index: {}]
  %s4 = inlined_call_operand.vmem [shape: s32[5], index: 4, kind: input, shape index: {}]
  %s5 = inlined_call_operand.vmem [shape: s32[5], index: 5, kind: input, shape index: {}]
  %s6 = inlined_call_operand.hbm [shape: bf16[32,256], index: 6, kind: input, shape index: {}]
  %s7 = inlined_call_operand.hbm [shape: bf16[4,128,128], index: 7, kind: input, shape index: {}]
  %s8 = inlined_call_operand.hbm [shape: f32[32,512], index: 8, kind: output, shape index: {}]
  %s9 = sld [smem:[#allocation0]]
  $region61: #{tpu_custom_call.1} parent=0
    _
  %s11 = ssub.s32 1, %s9
  %s12 = scalar_select 0, %s11, %s9
  %14 = dma.hbm_to_smem %s0, 16, [#allocation4], [#allocation3]
  %s15 = sshll.u32 %s1, 4
  %s16 = int_to_ptr.vmem [resolvable:$true] %s15
  %18 = dma.vmem_to_smem %s16, 16, [#allocation5], [#allocation3]
  %s19 = sshll.u32 %s2, 4
  %s20 = int_to_ptr.vmem [resolvable:$true] %s19
  %22 = dma.vmem_to_smem %s20, 16, [#allocation6], [#allocation3]
  %s23 = sshll.u32 %s3, 4
  %s24 = int_to_ptr.vmem [resolvable:$true] %s23
  %26 = dma.vmem_to_smem %s24, 16, [#allocation7], [#allocation3]
  %s27 = sshll.u32 %s4, 4
  %s28 = int_to_ptr.vmem [resolvable:$true] %s27
  %30 = dma.vmem_to_smem %s28, 16, [#allocation8], [#allocation3]
  %s31 = sshll.u32 %s5, 4
  %s32 = int_to_ptr.vmem [resolvable:$true] %s31
  %34 = dma.vmem_to_smem %s32, 16, [#allocation9], [#allocation3]
  %35 = dma.done [#allocation3], 96
  %36 = sfence
  $region1: #{tpu_custom_call.1} parent=0
    #allocation10 [shape = 'u8[16384]{0}', space=vmem, size = 0x4000, scoped, tag = 'input window, operand 6']
    #allocation11 [shape = 's32[2]{0}', space=sflag, size = 0x8, scoped, tag = 'scoped memory for tpu_custom_call.1']
    #allocation12 [shape = 's32[2]{0}', space=sflag, size = 0x8, scoped, tag = 'scoped memory for tpu_custom_call.1']
    #allocation13 [shape = 'u8[65536]{0}', space=vmem, size = 0x10000, scoped, tag = 'input window, operand 7']
    #allocation14 [shape = 's32[2]{0}', space=sflag, size = 0x8, scoped, tag = 'scoped memory for tpu_custom_call.1']
    #allocation15 [shape = 'u8[32768]{0}', space=vmem, size = 0x8000, scoped, tag = 'output window, operand 0']
    %37 = vsyncpa [#allocation11], 0
    %s38 = scalar_lea.sflag [#allocation11], 1
    %39 = vsyncpa %s38, 0
    %40 = vsyncpa [#allocation14], 0
    %s41 = scalar_lea.sflag [#allocation14], 1
    %42 = vsyncpa %s41, 0
    %43 = vsyncpa [#allocation12], 0
    %s44 = scalar_lea.sflag [#allocation12], 1
    %45 = vsyncpa %s44, 0
    loop: start=0, step=1, limit=7
    $region2: #{tpu_custom_call.1} parent=1 // loop_pre_header
      _
    $region3: #{tpu_custom_call.1} parent=1 // loop_header
      %s47 = sphi 0, %s51
      %p48 = scmp.ge.s32.totalorder %s47, 7
      %s54 = sphi 0, %s66
      %s55 = sphi 0, %s62
      %s56 = sphi 0, %s54
      %s57 = sphi 0, %s55
      %s58 = sphi 0, %s56
      %s59 = sphi 0, %s57
      %s73 = sphi 0, %s75
      %s76 = sphi 0, %s73
      %s77 = sphi 0, %s76
      %s93 = sphi 0, %s77
      %s101 = sphi 0, %s103
      %s104 = sphi 0, %s101
      %s105 = sphi 0, %s104
      %s121 = sphi 0, %s105
      %s131 = sphi 0, %s133
      %s134 = sphi 0, %s131
      %s135 = sphi 0, %s134
      %s151 = sphi 0, %s135
    $region4: #{tpu_custom_call.1} parent=1 // loop_header_branch
      %50 = sbr.rel (%p48) target = $region8
    $region5: #{tpu_custom_call.1} parent=1 // loop_body
      %s52 = ssub.s32 %s47, 1
      %s53 = ssub.s32 %s47, 2
      %s60 = sadd.s32 1, %s55
      %p61 = scmp.ge.s32.totalorder %s60, 5
      %s62 = scalar_select %p61, 0, %s60
      %s63 = sadd.s32 1, %s54
      %s64 = scalar_select %p61, %s63, %s54
      %p65 = scmp.ge.s32.totalorder %s64, 1
      %s66 = scalar_select %p65, 0, %s64
      %s67 = sld [smem:[#allocation4 + %s55]]
      %s68 = sld [smem:[#allocation4 + %s62]]
      %s69 = ssub.s32 %s54, %s66
      %s70 = ssub.s32 %s67, %s68
      %s71 = sor.u32 %s69, %s70
      %p72 = scmp.eq.s32.totalorder %s71, 0
      %s74 = sadd.s32 %s73, 1
      %s75 = scalar_select %p72, %s73, %s74
      %p78 = pneg %p72
      %p79 = scmp.eq.s32.totalorder %s47, 4
      %p80 = por %p78, %p79
      %p81 = scmp.ne.s32.totalorder %s73, %s76
      %p82 = scmp.eq.s32.totalorder %s47, 0
      %p83 = por %p81, %p82
      %p84 = scmp.ne.s32.totalorder %s73, %s76
      %p85 = scmp.eq.s32.totalorder %s52, 4
      %p86 = por %p84, %p85
      %p87 = scmp.ne.s32.totalorder %s76, %s77
      %p88 = scmp.eq.s32.totalorder %s52, 0
      %p89 = por %p87, %p88
      %p90 = scmp.ne.s32.totalorder %s76, %s77
      %p91 = scmp.eq.s32.totalorder %s53, 4
      %p92 = por %p90, %p91
      %p94 = scmp.ne.s32.totalorder %s77, %s93
      %p95 = scmp.eq.s32.totalorder %s53, 0
      %p96 = por %p94, %p95
      %s97 = sld [smem:[#allocation5 + %s55]]
      %s98 = sld [smem:[#allocation5 + %s62]]
      %s99 = ssub.s32 %s97, %s98
      %p100 = scmp.eq.s32.totalorder %s99, 0
      %s102 = sadd.s32 %s101, 1
      %s103 = scalar_select %p100, %s101, %s102
      %p106 = pneg %p100
      %p107 = scmp.eq.s32.totalorder %s47, 4
      %p108 = por %p106, %p107
      %p109 = scmp.ne.s32.totalorder %s101, %s104
      %p110 = scmp.eq.s32.totalorder %s47, 0
      %p111 = por %p109, %p110
      %p112 = scmp.ne.s32.totalorder %s101, %s104
      %p113 = scmp.eq.s32.totalorder %s52, 4
      %p114 = por %p112, %p113
      %p115 = scmp.ne.s32.totalorder %s104, %s105
      %p116 = scmp.eq.s32.totalorder %s52, 0
      %p117 = por %p115, %p116
      %p118 = scmp.ne.s32.totalorder %s104, %s105
      %p119 = scmp.eq.s32.totalorder %s53, 4
      %p120 = por %p118, %p119
      %p122 = scmp.ne.s32.totalorder %s105, %s121
      %p123 = scmp.eq.s32.totalorder %s53, 0
      %p124 = por %p122, %p123
      %s125 = sld [smem:[#allocation6 + %s55]]
      %s126 = sld [smem:[#allocation6 + %s62]]
      %s127 = ssub.s32 %s54, %s66
      %s128 = ssub.s32 %s125, %s126
      %s129 = sor.u32 %s127, %s128
      %p130 = scmp.eq.s32.totalorder %s129, 0
      %s132 = sadd.s32 %s131, 1
      %s133 = scalar_select %p130, %s131, %s132
      %p136 = pneg %p130
      %p137 = scmp.eq.s32.totalorder %s47, 4
      %p138 = por %p136, %p137
      %p139 = scmp.ne.s32.totalorder %s131, %s134
      %p140 = scmp.eq.s32.totalorder %s47, 0
      %p141 = por %p139, %p140
      %p142 = scmp.ne.s32.totalorder %s131, %s134
      %p143 = scmp.eq.s32.totalorder %s52, 4
      %p144 = por %p142, %p143
      %p145 = scmp.ne.s32.totalorder %s134, %s135
      %p146 = scmp.eq.s32.totalorder %s52, 0
      %p147 = por %p145, %p146
      %p148 = scmp.ne.s32.totalorder %s134, %s135
      %p149 = scmp.eq.s32.totalorder %s53, 4
      %p150 = por %p148, %p149
      %p152 = scmp.ne.s32.totalorder %s135, %s151
      %p153 = scmp.eq.s32.totalorder %s53, 0
      %p154 = por %p152, %p153
      %p155 = scmp.le.s32.totalorder 1, %s47
      %p156 = scmp.lt.s32.totalorder %s47, 6
      %p157 = pnand %p155, %p156
      %p158 = pneg %p157
      // Predicated region
      $region9: #{tpu_custom_call.1} parent=5 // pred_check
        _
      $region10: #{tpu_custom_call.1} parent=5 // pred_check_branch
        %160 = sbr.rel (%p157) target = $region12
      $region11: #{tpu_custom_call.1} parent=5 // pred_region
        %s161 = ssub.s32 %s47, 1
      $region12: #{tpu_custom_call.1} parent=5 // pred_fallthru
        _
      %p162 = scmp.lt.s32.totalorder %s47, 5
      // Predicated region
      $region13: #{tpu_custom_call.1} parent=5 // pred_check
        %p163 = pneg %p162
      $region14: #{tpu_custom_call.1} parent=5 // pred_check_branch
        %165 = sbr.rel (%p163) target = $region16
      $region15: #{tpu_custom_call.1} parent=5 // pred_region
        // Predicated region
        $region17: #{tpu_custom_call.1} parent=15 // pred_check
          %p166 = pneg %p83
        $region18: #{tpu_custom_call.1} parent=15 // pred_check_branch
          %168 = sbr.rel (%p166) target = $region20
        $region19: #{tpu_custom_call.1} parent=15 // pred_region
          %s169 = sand.u32 %s73, 1
          %s170 = scalar_lea.sflag [#allocation11], %s169
          %s171 = sand.u32 %s73, 1
          %s172 = smul.addr %s171, 16
          %s173 = scalar_lea.vmem [#allocation10], %s172
          %s174 = sld [smem:[#allocation4 + %s55]]
          %s175 = smul.u32 4, %s54
          %s177 = ssub.s32 256, 256
          %178 = vsyncadd %s170, %s177
          %s179 = smul.addr %s175, 2
          %s180 = sadd.s32 %s174, %s179
          %s181 = smul.addr %s180, 64
          %s182 = scalar_lea.hbm %s6, %s181
          %s183 = sshll.u32 %s173, 4
          %s184 = int_to_ptr.vmem [resolvable:$true] %s183
          %189 = dma.hbm_to_vmem [thread:$0]  %s182, 256, %s184, %s170, 128, 64, 4
        $region20: #{tpu_custom_call.1} parent=15 // pred_fallthru
          _
        // Predicated region
        $region21: #{tpu_custom_call.1} parent=15 // pred_check
          %p190 = pneg %p111
        $region22: #{tpu_custom_call.1} parent=15 // pred_check_branch
          %192 = sbr.rel (%p190) target = $region24
        $region23: #{tpu_custom_call.1} parent=15 // pred_region
          %s193 = sand.u32 %s101, 1
          %s194 = scalar_lea.sflag [#allocation14], %s193
          %s195 = sand.u32 %s101, 1
          %s196 = smul.addr %s195, 64
          %s197 = scalar_lea.vmem [#allocation13], %s196
          %s198 = sld [smem:[#allocation5 + %s55]]
          %s200 = ssub.s32 1024, 1024
          %201 = vsyncadd %s194, %s200
          %s202 = smul.addr %s198, 16
          %s203 = smul.addr %s202, 64
          %s204 = scalar_lea.hbm %s7, %s203
          %s205 = sshll.u32 %s197, 4
          %s206 = int_to_ptr.vmem [resolvable:$true] %s205
          %211 = dma.hbm_to_vmem [thread:$0]  %s204, 1024, %s206, %s194, 64, 64, 4
        $region24: #{tpu_custom_call.1} parent=15 // pred_fallthru
          _
      $region16: #{tpu_custom_call.1} parent=5 // pred_fallthru
        _
      %p212 = scmp.le.s32.totalorder 1, %s47
      %p213 = scmp.lt.s32.totalorder %s47, 6
      %p214 = pnand %p212, %p213
      %p215 = pneg %p214
      // Predicated region
      $region25: #{tpu_custom_call.1} parent=5 // pred_check
        _
      $region26: #{tpu_custom_call.1} parent=5 // pred_check_branch
        %217 = sbr.rel (%p214) target = $region28
      $region27: #{tpu_custom_call.1} parent=5 // pred_region
        %s218 = ssub.s32 %s47, 1
        %s219 = sand.u32 %s76, 1
        %s220 = scalar_lea.sflag [#allocation11], %s219
        %s221 = sand.u32 %s76, 1
        %s222 = smul.addr %s221, 16
        %s223 = scalar_lea.vmem [#allocation10], %s222
        // Predicated region
        $region29: #{tpu_custom_call.1} parent=27 // pred_check
          %p224 = pneg %p89
        $region30: #{tpu_custom_call.1} parent=27 // pred_check_branch
          %226 = sbr.rel (%p224) target = $region32
        $region31: #{tpu_custom_call.1} parent=27 // pred_region
          %227 = dma.done %s220, 256
        $region32: #{tpu_custom_call.1} parent=27 // pred_fallthru
          _
        %s228 = sand.u32 %s104, 1
        %s229 = scalar_lea.sflag [#allocation14], %s228
        %s230 = sand.u32 %s104, 1
        %s231 = smul.addr %s230, 64
        %s232 = scalar_lea.vmem [#allocation13], %s231
        // Predicated region
        $region33: #{tpu_custom_call.1} parent=27 // pred_check
          %p233 = pneg %p117
        $region34: #{tpu_custom_call.1} parent=27 // pred_check_branch
          %235 = sbr.rel (%p233) target = $region36
        $region35: #{tpu_custom_call.1} parent=27 // pred_region
          %236 = dma.done %s229, 1024
        $region36: #{tpu_custom_call.1} parent=27 // pred_fallthru
          _
        %s237 = sand.u32 %s76, 1
        %s238 = scalar_lea.sflag [#allocation11], %s237
        %s239 = sand.u32 %s76, 1
        %s240 = smul.addr %s239, 16
        %s241 = scalar_lea.vmem [#allocation10], %s240
        %p242 = pneg %p89
        %p243 = pneg %p86
        %s244 = sand.u32 %s104, 1
        %s245 = scalar_lea.sflag [#allocation14], %s244
        %s246 = sand.u32 %s104, 1
        %s247 = smul.addr %s246, 64
        %s248 = scalar_lea.vmem [#allocation13], %s247
        %p249 = pneg %p117
        %p250 = pneg %p114
        %p251 = pneg %p147
        %p252 = pneg %p144
        %s253 = sand.u32 %s134, 1
        %s254 = scalar_lea.sflag [#allocation12], %s253
        %s255 = sand.u32 %s134, 1
        %s256 = smul.addr %s255, 32
        %s257 = scalar_lea.vmem [#allocation15], %s256
        %s258 = sld [smem:[#allocation4 + %s57]]
        %s259 = smul.u32 4, %s56
        %s260 = sld [smem:[#allocation5 + %s57]]
        %s261 = sld [smem:[#allocation6 + %s57]]
        %s262 = smul.u32 4, %s56
        %s264 = sld [smem:[#allocation7 + %s57]]
        %p265 = scmp.eq.s32.totalorder %s264, 1
        // Predicated region
        $region37: #{tpu_custom_call.1} parent=27 // pred_check
          %p266 = pneg %p265
        $region38: #{tpu_custom_call.1} parent=27 // pred_check_branch
          %268 = sbr.rel (%p266) target = $region40
        $region39: #{tpu_custom_call.1} parent=27 // pred_region
          %269 = vst [vmem:[#allocation2] sm:$0xff] 0.0
          %270 = vst [vmem:[#allocation2 + $0x8] sm:$0xff] 0.0
          %271 = vst [vmem:[#allocation2 + $0x10] sm:$0xff] 0.0
          %272 = vst [vmem:[#allocation2 + $0x18] sm:$0xff] 0.0
        $region40: #{tpu_custom_call.1} parent=27 // pred_fallthru
          _
        %s273 = sld [smem:[#allocation9 + %s57]]
        %p274 = scmp.eq.s32.totalorder %s273, 1
        // Predicated region
        $region41: #{tpu_custom_call.1} parent=27 // pred_check
          %p275 = pneg %p274
        $region42: #{tpu_custom_call.1} parent=27 // pred_check_branch
          %277 = sbr.rel (%p275) target = $region44
        $region43: #{tpu_custom_call.1} parent=27 // pred_region
          %v278 = vld [vmem:[#allocation2] sm:$0xff]
          %v279 = vld [vmem:[#allocation2 + $0x8] sm:$0xff]
          %v280 = vld [vmem:[#allocation2 + $0x10] sm:$0xff]
          %v281 = vld [vmem:[#allocation2 + $0x18] sm:$0xff]
          %v282 = vld [vmem:[%s223] sm:$0xf]
          %v283 = vld [vmem:[%s223 + $0x4] sm:$0xf]
          %v284 = vld [vmem:[%s223 + $0x8] sm:$0xf]
          %v285 = vld [vmem:[%s223 + $0xc] sm:$0xf]
          %v286 = vld [vmem:[%s232] sm:$0xf]
          %v287 = vld [vmem:[%s232 + $0x4] sm:$0xf]
          %v288 = vld [vmem:[%s232 + $0x8] sm:$0xf]
          %v289 = vld [vmem:[%s232 + $0xc] sm:$0xf]
          %v290 = vld [vmem:[%s232 + $0x10] sm:$0xf]
          %v291 = vld [vmem:[%s232 + $0x14] sm:$0xf]
          %v292 = vld [vmem:[%s232 + $0x18] sm:$0xf]
          %v293 = vld [vmem:[%s232 + $0x1c] sm:$0xf]
          %v294 = vld [vmem:[%s232 + $0x20] sm:$0xf]
          %v295 = vld [vmem:[%s232 + $0x24] sm:$0xf]
          %v296 = vld [vmem:[%s232 + $0x28] sm:$0xf]
          %v297 = vld [vmem:[%s232 + $0x2c] sm:$0xf]
          %v298 = vld [vmem:[%s232 + $0x30] sm:$0xf]
          %v299 = vld [vmem:[%s232 + $0x34] sm:$0xf]
          %v300 = vld [vmem:[%s232 + $0x38] sm:$0xf]
          %v301 = vld [vmem:[%s232 + $0x3c] sm:$0xf]
          %v306 = vunpack.c.l.b16 %v282
          %v307 = vunpack.c.l.b16 %v283
          %v308 = vunpack.c.l.b16 %v284
          %v309 = vunpack.c.l.b16 %v285
          %v310 = vpack.c.b16 %v307, %v306
          %v311 = vpack.c.b16 %v309, %v308
          %v330 = vunpack.c.l.b16 %v286
          %v331 = vunpack.c.l.b16 %v287
          %v332 = vunpack.c.l.b16 %v288
          %v333 = vunpack.c.l.b16 %v289
          %v334 = vunpack.c.l.b16 %v290
          %v335 = vunpack.c.l.b16 %v291
          %v336 = vunpack.c.l.b16 %v292
          %v337 = vunpack.c.l.b16 %v293
          %v338 = vunpack.c.l.b16 %v294
          %v339 = vunpack.c.l.b16 %v295
          %v340 = vunpack.c.l.b16 %v296
          %v341 = vunpack.c.l.b16 %v297
          %v342 = vunpack.c.l.b16 %v298
          %v343 = vunpack.c.l.b16 %v299
          %v344 = vunpack.c.l.b16 %v300
          %v345 = vunpack.c.l.b16 %v301
          %v346 = vpack.c.b16 %v331, %v330
          %v347 = vpack.c.b16 %v333, %v332
          %v348 = vpack.c.b16 %v335, %v334
          %v349 = vpack.c.b16 %v337, %v336
          %v350 = vpack.c.b16 %v339, %v338
          %v351 = vpack.c.b16 %v341, %v340
          %v352 = vpack.c.b16 %v343, %v342
          %v353 = vpack.c.b16 %v345, %v344
          %362 = vmatprep.subr.bf16.mxu0 0
          %363 = vmatpush1.bf16.msra.mxu0 %v353
          %364 = vmatprep.subr.bf16.mxu0 0
          %365 = vmatpush1.bf16.msra.mxu0 %v352
          %366 = vmatprep.subr.bf16.mxu0 0
          %367 = vmatpush1.bf16.msra.mxu0 %v351
          %368 = vmatprep.subr.bf16.mxu0 0
          %369 = vmatpush1.bf16.msra.mxu0 %v350
          %370 = vmatprep.subr.bf16.mxu0 0
          %371 = vmatpush1.bf16.msra.mxu0 %v349
          %372 = vmatprep.subr.bf16.mxu0 0
          %373 = vmatpush1.bf16.msra.mxu0 %v348
          %374 = vmatprep.subr.bf16.mxu0 0
          %375 = vmatpush1.bf16.msra.mxu0 %v347
          %376 = vmatprep.subr.bf16.mxu0 0
          %377 = vmatpush1.bf16.msra.mxu0 %v346
          %378 = vmatprep.subr.bf16.mxu0 0
          %379 = vmatpush2.bf16.msra.mxu0 0
          %380 = vmatprep.subr.bf16.mxu0 0
          %381 = vmatpush2.bf16.msra.mxu0 0
          %382 = vmatprep.subr.bf16.mxu0 0
          %383 = vmatpush2.bf16.msra.mxu0 0
          %384 = vmatprep.subr.bf16.mxu0 0
          %385 = vmatpush2.bf16.msra.mxu0 0
          %386 = vmatprep.subr.bf16.mxu0 0
          %387 = vmatpush2.bf16.msra.mxu0 0
          %388 = vmatprep.subr.bf16.mxu0 0
          %389 = vmatpush2.bf16.msra.mxu0 0
          %390 = vmatprep.subr.bf16.mxu0 0
          %391 = vmatpush2.bf16.msra.mxu0 0
          %392 = vmatprep.subr.bf16.mxu0 0
          %393 = vmatpush2.bf16.msra.mxu0 0
          %394 = vmatprep.mubr.bf16.mxu0 0
          %395 = vmatmul.mubr.bf16.gmra.mxu0 %v310
          %v396 = vpop.f32.mrf.mxu0
          %v397 = vadd.f32 0.0, %v396
          %v398 = vpop.f32.mrf.mxu0
          %v399 = vpop.f32.mrf.mxu0
          %v400 = vadd.f32 0.0, %v399
          %v401 = vpop.f32.mrf.mxu0
          %402 = vmatprep.mubr.bf16.mxu0 0
          %403 = vmatmul.mubr.bf16.gmra.mxu0 %v311
          %v404 = vpop.f32.mrf.mxu0
          %v405 = vadd.f32 0.0, %v404
          %v406 = vpop.f32.mrf.mxu0
          %v407 = vpop.f32.mrf.mxu0
          %v408 = vadd.f32 0.0, %v407
          %v409 = vpop.f32.mrf.mxu0
          %410 = vdwg.mxu0
          %v411 = vadd.f32 %v278, %v397
          %v412 = vadd.f32 %v279, %v400
          %v413 = vadd.f32 %v280, %v405
          %v414 = vadd.f32 %v281, %v408
          %415 = vst [vmem:[#allocation2] sm:$0xff] %v411
          %416 = vst [vmem:[#allocation2 + $0x8] sm:$0xff] %v412
          %417 = vst [vmem:[#allocation2 + $0x10] sm:$0xff] %v413
          %418 = vst [vmem:[#allocation2 + $0x18] sm:$0xff] %v414
        $region44: #{tpu_custom_call.1} parent=27 // pred_fallthru
          _
        %s419 = sld [smem:[#allocation8 + %s57]]
        %p420 = scmp.eq.s32.totalorder %s419, 1
        // Predicated region
        $region45: #{tpu_custom_call.1} parent=27 // pred_check
          %p421 = pneg %p420
        $region46: #{tpu_custom_call.1} parent=27 // pred_check_branch
          %423 = sbr.rel (%p421) target = $region48
        $region47: #{tpu_custom_call.1} parent=27 // pred_region
          %v424 = vld [vmem:[#allocation2] sm:$0xff]
          %v425 = vld [vmem:[#allocation2 + $0x8] sm:$0xff]
          %v426 = vld [vmem:[#allocation2 + $0x10] sm:$0xff]
          %v427 = vld [vmem:[#allocation2 + $0x18] sm:$0xff]
          %428 = vst [vmem:[%s257] sm:$0xff] %v424
          %429 = vst [vmem:[%s257 + $0x8] sm:$0xff] %v425
          %430 = vst [vmem:[%s257 + $0x10] sm:$0xff] %v426
          %431 = vst [vmem:[%s257 + $0x18] sm:$0xff] %v427
        $region48: #{tpu_custom_call.1} parent=27 // pred_fallthru
          _
        %s432 = sand.u32 %s134, 1
        %s433 = scalar_lea.sflag [#allocation12], %s432
        %s434 = sand.u32 %s134, 1
        %s435 = smul.addr %s434, 32
        %s436 = scalar_lea.vmem [#allocation15], %s435
        // Predicated region
        $region49: #{tpu_custom_call.1} parent=27 // pred_check
          %p437 = pneg %p144
        $region50: #{tpu_custom_call.1} parent=27 // pred_check_branch
          %439 = sbr.rel (%p437) target = $region52
        $region51: #{tpu_custom_call.1} parent=27 // pred_region
          %s440 = sld [smem:[#allocation6 + %s57]]
          %s441 = smul.u32 4, %s56
          %s443 = ssub.s32 512, 512
          %444 = vsyncadd %s433, %s443
          %s445 = smul.addr %s441, 4
          %s446 = sadd.s32 %s440, %s445
          %s447 = smul.addr %s446, 128
          %s448 = scalar_lea.hbm %s8, %s447
          %s449 = sshll.u32 %s436, 4
          %s450 = int_to_ptr.vmem [resolvable:$true] %s449
          %455 = dma.vmem_to_hbm [thread:$0]  %s450, 512, %s448, %s433, 128, 512, 8
        $region52: #{tpu_custom_call.1} parent=27 // pred_fallthru
          _
      $region28: #{tpu_custom_call.1} parent=5 // pred_fallthru
        _
      %p456 = scmp.le.s32.totalorder 2, %s47
      // Predicated region
      $region53: #{tpu_custom_call.1} parent=5 // pred_check
        %p457 = pneg %p456
      $region54: #{tpu_custom_call.1} parent=5 // pred_check_branch
        %459 = sbr.rel (%p457) target = $region56
      $region55: #{tpu_custom_call.1} parent=5 // pred_region
        %s460 = ssub.s32 %s47, 2
        // Predicated region
        $region57: #{tpu_custom_call.1} parent=55 // pred_check
          %p461 = pneg %p150
        $region58: #{tpu_custom_call.1} parent=55 // pred_check_branch
          %463 = sbr.rel (%p461) target = $region60
        $region59: #{tpu_custom_call.1} parent=55 // pred_region
          %s464 = sand.u32 %s135, 1
          %s465 = scalar_lea.sflag [#allocation12], %s464
          %s466 = sand.u32 %s135, 1
          %s467 = smul.addr %s466, 32
          %s468 = scalar_lea.vmem [#allocation15], %s467
          %469 = dma.done %s465, 512
        $region60: #{tpu_custom_call.1} parent=55 // pred_fallthru
          _
      $region56: #{tpu_custom_call.1} parent=5 // pred_fallthru
        _
    $region6: #{tpu_custom_call.1} parent=1 // loop_footer
      %s51 = sadd.s32 1, %s47
    $region7: #{tpu_custom_call.1} parent=1 // loop_footer_branch
      %46 = sbr.rel target = $region3
    $region8: #{tpu_custom_call.1} parent=1 // loop_exit
      _
    %470 = vsyncpa [#allocation11], 1
    %s471 = scalar_lea.sflag [#allocation11], 1
    %472 = vsyncpa %s471, 1
    %473 = vsyncpa [#allocation14], 1
    %s474 = scalar_lea.sflag [#allocation14], 1
    %475 = vsyncpa %s474, 1
    %476 = vsyncpa [#allocation12], 1
    %s477 = scalar_lea.sflag [#allocation12], 1
    %478 = vsyncpa %s477, 1

</llo_original>
